<compile_context>
chip_gen: v7x
topology: tpu7x:2x2x1
jax: 0.10.0
libtpu: 0.0.40
codegen_flags: <defaults>
</compile_context>

<pallas_src>
import functools

import jax
import jax.numpy as jnp
from jax import lax
from jax.experimental import pallas as pl
from jax.experimental.pallas import tpu as pltpu


def _round_up(v, m):
    return ((v + m - 1) // m) * m


def _vmem_capacity_bytes():
    try:
        info = pltpu.get_tpu_info()
        cap = getattr(info, "vmem_capacity_bytes", None)
        if cap:
            return int(cap)
    except Exception:
        pass
    return 64 << 20   # most conservative (v7x per-TensorCore)


# -----------------------------------------------------------------------------
# Kernel 1: RMSNorm(context) fused with to_kv; one grid step per batch element.
# Emits K and V as lane-dense (dim_inner, N) bf16.
# -----------------------------------------------------------------------------
def _kv_proj_kernel(ctx_ref, wk_ref, wv_ref, k_ref, v_ref, *, eps):
    c = ctx_ref[0].astype(jnp.float32)                        # (N, Dc)
    sumsq = jnp.sum(c * c, axis=-1, keepdims=True)            # (N, 1)
    inv = lax.rsqrt(jnp.maximum(sumsq, eps * eps))            # == 1/max(||c||, eps)
    normed = (c * inv).astype(jnp.bfloat16)                   # (N, Dc) bf16 MXU input

    dn = (((1,), (1,)), ((), ()))                             # contract the Dc axis
    k = lax.dot_general(wk_ref[...], normed, dn,
                        preferred_element_type=jnp.float32)   # (dim_inner, N)
    v = lax.dot_general(wv_ref[...], normed, dn,
                        preferred_element_type=jnp.float32)   # (dim_inner, N)
    k_ref[0] = k.astype(k_ref.dtype)
    v_ref[0] = v.astype(v_ref.dtype)


# -----------------------------------------------------------------------------
# Kernel 2: ChannelRMSNorm(fmap) + to_q + softmax attention + to_out,
# channels-first.  grid = (batch, spatial tile); heads via lax.fori_loop.
# -----------------------------------------------------------------------------
def _attn_kernel(x_ref, wq_ref, k_ref, v_ref, wout_ref, o_ref, q_scr, oh_scr,
                 *, heads, dim_head, eps):
    x = x_ref[0].astype(jnp.float32)                          # (C, T)
    sumsq = jnp.sum(x * x, axis=0, keepdims=True)             # (1, T) channel reduce
    inv = lax.rsqrt(jnp.maximum(sumsq, eps * eps))            # (1, T)

    # (wq @ (x * inv)) == (wq @ x) * inv : inv is constant across channels.
    q = jnp.dot(wq_ref[...], x.astype(jnp.bfloat16),
                preferred_element_type=jnp.float32) * inv     # (h*d, T) f32
    q_scr[...] = q

    def head_body(h, carry):
        off = pl.multiple_of(h * dim_head, dim_head)
        qh = q_scr[pl.ds(off, dim_head), :].astype(jnp.bfloat16)   # (d, T)
        kh = k_ref[0, h]                                           # (d, N) bf16
        vh = v_ref[0, h]                                           # (d, N) bf16

        dn = (((0,), (0,)), ((), ()))                              # contract d with d
        sim_t = lax.dot_general(kh, qh, dn,
                                preferred_element_type=jnp.float32)  # (N, T)
        m = jnp.max(sim_t, axis=0, keepdims=True)                  # (1, T)
        e = jnp.exp(sim_t - m)                                     # (N, T)
        l = jnp.sum(e, axis=0, keepdims=True)                      # (1, T)
        # Deferred normalization: V @ e first, then one EUP reciprocal multiply.
        oh = jnp.dot(vh, e.astype(jnp.bfloat16),
                     preferred_element_type=jnp.float32)           # (d, T)
        oh_scr[pl.ds(off, dim_head), :] = oh * pl.reciprocal(l, approx=True)
        return carry

    lax.fori_loop(0, heads, head_body, 0)

    # Single full-contraction output projection across all heads.
    out = jnp.dot(wout_ref[...], oh_scr[...].astype(jnp.bfloat16),
                  preferred_element_type=jnp.float32)              # (dim_out, T)
    o_ref[0] = out.astype(o_ref.dtype)


# -----------------------------------------------------------------------------
# Wrapper
# -----------------------------------------------------------------------------
def cross_attention(fmap, context, *, wq, wkv, wout, gamma_fmap, gamma_ctx,
                    heads, dim_head, eps=1e-12,
                    vmem_budget_bytes=None, max_tile_hw=8192):
    """CrossAttention forward (mask=None).

    fmap: (B, C, H, W); context: (B, N, Dc)
    wq: (heads*dim_head, C); wkv: (2*heads*dim_head, Dc); wout: (C_out, heads*dim_head)
    gamma_fmap: (C, 1, 1); gamma_ctx: (Dc,)
    """
    B, C, H, W = fmap.shape
    Bc, N, Dc = context.shape
    assert Bc == B
    dim_inner = heads * dim_head
    assert wkv.shape == (2 * dim_inner, Dc)
    assert dim_head % 8 == 0, "dim_head must be a multiple of 8 (f32 sublane)"
    dim_out = wout.shape[0]
    HW = H * W
    kv_dtype = jnp.bfloat16

    # ---- fold norm scale*gamma (and attention scale) into bf16 weights ----
    g_f = (gamma_fmap.reshape(-1).astype(jnp.float32) * (C ** 0.5)
           * (dim_head ** -0.5))
    wq_s = (wq.reshape(dim_inner, C).astype(jnp.float32)
            * g_f[None, :]).astype(jnp.bfloat16)
    g_c = gamma_ctx.reshape(-1).astype(jnp.float32) * (Dc ** 0.5)
    wkv_s = wkv.astype(jnp.float32) * g_c[None, :]
    wk_s = wkv_s[:dim_inner].astype(jnp.bfloat16)                   # (dim_inner, Dc)
    wv_s = wkv_s[dim_inner:].astype(jnp.bfloat16)                   # (dim_inner, Dc)
    wout_b = wout.reshape(dim_out, dim_inner).astype(jnp.bfloat16)  # (dim_out, dim_inner)

    vmem_cap = _vmem_capacity_bytes()

    # ---- kernel 1: K/V projection, one batch element per grid step ----
    k1_bytes = (2 * _round_up(N, 8) * _round_up(Dc, 128) * 4            # ctx block x2
                + 2 * 2 * _round_up(dim_inner, 16) * _round_up(Dc, 128) * 2  # wk+wv x2
                + 2 * 2 * _round_up(dim_inner, 16) * _round_up(N, 128) * 2   # K+V out x2
                + _round_up(N, 8) * _round_up(Dc, 128) * 6                   # normed tmp
                + (2 << 20))
    vlimit1 = int(min(max(int(k1_bytes * 1.5) + (4 << 20), 32 << 20),
                      int(vmem_cap * 0.875)))

    kv_kernel = functools.partial(_kv_proj_kernel, eps=eps)
    k, v = pl.pallas_call(
        kv_kernel,
        out_shape=(
            jax.ShapeDtypeStruct((B, dim_inner, N), kv_dtype),
            jax.ShapeDtypeStruct((B, dim_inner, N), kv_dtype),
        ),
        grid_spec=pltpu.PrefetchScalarGridSpec(
            num_scalar_prefetch=0,
            grid=(B,),
            in_specs=[
                pl.BlockSpec((1, N, Dc), lambda b: (b, 0, 0)),
                pl.BlockSpec((dim_inner, Dc), lambda b: (0, 0)),
                pl.BlockSpec((dim_inner, Dc), lambda b: (0, 0)),
            ],
            out_specs=[
                pl.BlockSpec((1, dim_inner, N), lambda b: (b, 0, 0)),
                pl.BlockSpec((1, dim_inner, N), lambda b: (b, 0, 0)),
            ],
        ),
        compiler_params=pltpu.CompilerParams(
            dimension_semantics=("parallel",),
            vmem_limit_bytes=vlimit1),
    )(context, wk_s, wv_s)

    # Metadata-only reshape (contiguous split): per-head views (heads, d, N).
    k = k.reshape(B, heads, dim_head, N)
    v = v.reshape(B, heads, dim_head, N)

    # ---- kernel 2: tile selection with resident-block accounting ----
    xb = jnp.dtype(fmap.dtype).itemsize
    ob = xb
    fixed = (2 * _round_up(dim_inner, 16) * _round_up(C, 128) * 2          # wq (x2 buf)
             + 2 * _round_up(dim_out, 16) * _round_up(dim_inner, 128) * 2  # wout (x2)
             + 2 * 2 * _round_up(dim_inner, 16) * _round_up(N, 128) * 2    # K + V (x2)
             + (2 << 20))                                                  # slack
    per_lane = (2 * _round_up(C, 8) * xb           # x block (double buffered)
                + 2 * _round_up(dim_out, 8) * ob   # out block (double buffered)
                + 2 * dim_inner * 4                # q_scr + oh_scr (f32)
                + 4 * _round_up(N, 8) * 4          # sim_t / exp temporaries
                + 2 * dim_inner)                   # bf16 cast temporaries

    if vmem_budget_bytes is None:
        vmem_budget_bytes = min(48 << 20, vmem_cap // 2)
    avail = max(vmem_budget_bytes - fixed, per_lane * 128)
    tile_limit = max(128, min(max_tile_hw, (avail // per_lane) // 128 * 128))

    if HW <= tile_limit:
        tile_hw = HW                       # full-dim block: always legal
        # keep >= 2 grid points so both v7x TensorCores get work
        if B == 1 and tile_hw % 256 == 0:
            tile_hw //= 2
    else:
        tile_hw = tile_limit               # lane-aligned tile; pad HW up to it
    HW_pad = _round_up(HW, tile_hw)
    grid_t = HW_pad // tile_hw

    x_flat = fmap.reshape(B, C, HW)
    if HW_pad != HW:
        # Zero-padded columns stay finite through the softmax (q=0 -> uniform
        # attention) and are sliced away after the kernel.
        x_flat = jnp.pad(x_flat, ((0, 0), (0, 0), (0, HW_pad - HW)))

    vlimit2 = int(min(max(int((fixed + per_lane * tile_hw) * 1.4) + (4 << 20),
                          32 << 20),
                      int(vmem_cap * 0.875)))

    attn_kernel = functools.partial(_attn_kernel, heads=heads,
                                    dim_head=dim_head, eps=eps)
    out_flat = pl.pallas_call(
        attn_kernel,
        out_shape=jax.ShapeDtypeStruct((B, dim_out, HW_pad), fmap.dtype),
        grid_spec=pltpu.PrefetchScalarGridSpec(
            num_scalar_prefetch=0,
            grid=(B, grid_t),
            in_specs=[
                pl.BlockSpec((1, C, tile_hw), lambda b, t: (b, 0, t)),
                pl.BlockSpec((dim_inner, C), lambda b, t: (0, 0)),
                pl.BlockSpec((1, heads, dim_head, N), lambda b, t: (b, 0, 0, 0)),
                pl.BlockSpec((1, heads, dim_head, N), lambda b, t: (b, 0, 0, 0)),
                pl.BlockSpec((dim_out, dim_inner), lambda b, t: (0, 0)),
            ],
            out_specs=pl.BlockSpec((1, dim_out, tile_hw), lambda b, t: (b, 0, t)),
            scratch_shapes=[
                pltpu.VMEM((dim_inner, tile_hw), jnp.float32),   # q
                pltpu.VMEM((dim_inner, tile_hw), jnp.float32),   # per-head outputs
            ],
        ),
        compiler_params=pltpu.CompilerParams(
            dimension_semantics=("parallel", "parallel"),
            vmem_limit_bytes=vlimit2),
    )(x_flat, wq_s, k, v, wout_b)

    out = out_flat[:, :, :HW] if HW_pad != HW else out_flat
    return out.reshape(B, dim_out, H, W)


# -----------------------------------------------------------------------------
# Pure-JAX reference mirroring the PyTorch forward (mask=None)
# -----------------------------------------------------------------------------
def cross_attention_ref(fmap, context, *, wq, wkv, wout, gamma_fmap, gamma_ctx,
                        heads, dim_head):
    B, C, H, W = fmap.shape
    Dc = context.shape[-1]
    dim_inner = heads * dim_head
    hp = lax.Precision.HIGHEST

    n = jnp.sqrt(jnp.sum(fmap * fmap, axis=1, keepdims=True))
    f = fmap / jnp.maximum(n, 1e-12) * (C ** 0.5) * gamma_fmap.reshape(1, C, 1, 1)

    cn = jnp.sqrt(jnp.sum(context * context, axis=-1, keepdims=True))
    c = context / jnp.maximum(cn, 1e-12) * (Dc ** 0.5) * gamma_ctx.reshape(1, 1, Dc)

    q = jnp.einsum('oc,bchw->bohw', wq, f, precision=hp)
    kv = jnp.einsum('of,bnf->bno', wkv, c, precision=hp)
    k, v = kv[..., :dim_inner], kv[..., dim_inner:]

    q = q.reshape(B, heads, dim_head, H * W).transpose(0, 1, 3, 2)   # b h i d
    k = k.reshape(B, -1, heads, dim_head).transpose(0, 2, 1, 3)      # b h j d
    v = v.reshape(B, -1, heads, dim_head).transpose(0, 2, 1, 3)      # b h j d

    sim = jnp.einsum('bhid,bhjd->bhij', q, k, precision=hp) * (dim_head ** -0.5)
    attn = jax.nn.softmax(sim, axis=-1)
    o = jnp.einsum('bhij,bhjd->bhid', attn, v, precision=hp)
    o = o.transpose(0, 1, 3, 2).reshape(B, dim_inner, H, W)
    return jnp.einsum('oc,bchw->bohw', wout, o, precision=hp)


if __name__ == "__main__":
    key = jax.random.PRNGKey(0)
    B = 2
    dim = 8              # fmap channels
    H = W = 8            # spatial
    dim_context = 16
    heads, dim_head = 2, 32
    n_ctx = 8
    dim_inner = heads * dim_head

    ks = jax.random.split(key, 7)
    fmap = jax.random.normal(ks[0], (B, dim, H, W), dtype=jnp.float32)
    context = jax.random.normal(ks[1], (B, n_ctx, dim_context), dtype=jnp.float32)
    wq = 0.2 * jax.random.normal(ks[2], (dim_inner, dim), dtype=jnp.float32)
    wkv = 0.2 * jax.random.normal(ks[3], (2 * dim_inner, dim_context), dtype=jnp.float32)
    wout = 0.2 * jax.random.normal(ks[4], (dim, dim_inner), dtype=jnp.float32)
    # module inits gammas to ones; perturb slightly so the weight folding is exercised
    gamma_fmap = 1.0 + 0.1 * jax.random.normal(ks[5], (dim, 1, 1), dtype=jnp.float32)
    gamma_ctx = 1.0 + 0.1 * jax.random.normal(ks[6], (dim_context,), dtype=jnp.float32)

    out = cross_attention(fmap, context, wq=wq, wkv=wkv, wout=wout,
                          gamma_fmap=gamma_fmap, gamma_ctx=gamma_ctx,
                          heads=heads, dim_head=dim_head)
    out = jax.block_until_ready(out)

    ref = cross_attention_ref(fmap, context, wq=wq, wkv=wkv, wout=wout,
                              gamma_fmap=gamma_fmap, gamma_ctx=gamma_ctx,
                              heads=heads, dim_head=dim_head)
    assert out.shape == (B, dim, H, W)
    max_err = float(jnp.max(jnp.abs(out - ref)))
    # bf16 MXU inputs with f32 accumulation vs f32-HIGHEST reference.
    assert jnp.allclose(out, ref, atol=5e-2, rtol=5e-2), f"max_abs_err={max_err}"
    print("KERNEL_OK")
</pallas_src>

<mosaic_0001>
module attributes {stable_mosaic.version = 11 : i64} {
  func.func @_kv_proj_kernel(%arg0: i32, %arg1: memref<1x8x16xf32, #tpu.memory_space<vmem>>, %arg2: memref<64x16xbf16, #tpu.memory_space<vmem>>, %arg3: memref<64x16xbf16, #tpu.memory_space<vmem>>, %arg4: memref<1x64x8xbf16, #tpu.memory_space<vmem>>, %arg5: memref<1x64x8xbf16, #tpu.memory_space<vmem>>) attributes {dimension_semantics = [#tpu.dimension_semantics<parallel>], iteration_bounds = array<i64: 2>, scalar_prefetch = 0 : i64, scratch_operands = 0 : i64, tpu.core_type = #tpu.core_type<tc>, window_params = [{transform_indices = @transform_0, window_bounds = array<i64: 1, 8, 16>}, {pipeline_mode = #tpu.pipeline_mode<synchronous>, transform_indices = @transform_1, window_bounds = array<i64: 64, 16>}, {pipeline_mode = #tpu.pipeline_mode<synchronous>, transform_indices = @transform_2, window_bounds = array<i64: 64, 16>}, {transform_indices = @transform_3, window_bounds = array<i64: 1, 64, 8>}, {transform_indices = @transform_4, window_bounds = array<i64: 1, 64, 8>}]} {
    %c0 = arith.constant 0 : index
    %c0_0 = arith.constant 0 : index
    %c0_1 = arith.constant 0 : index
    %0 = vector.load %arg1[%c0, %c0_0, %c0_1] : memref<1x8x16xf32, #tpu.memory_space<vmem>>, vector<1x8x16xf32>
    %1 = vector.shape_cast %0 : vector<1x8x16xf32> to vector<8x16xf32>
    %2 = arith.mulf %1, %1 : vector<8x16xf32>
    %cst = arith.constant dense<0.000000e+00> : vector<8xf32>
    %3 = vector.multi_reduction <add>, %2, %cst [1] : vector<8x16xf32> to vector<8xf32>
    %4 = vector.shape_cast %3 : vector<8xf32> to vector<8x1xf32>
    %cst_2 = arith.constant 1.000000e-24 : f32
    %5 = vector.broadcast %cst_2 : f32 to vector<8x1xf32>
    %6 = arith.maximumf %4, %5 : vector<8x1xf32>
    %7 = math.rsqrt %6 : vector<8x1xf32>
    %8 = vector.broadcast %7 : vector<8x1xf32> to vector<8x16xf32>
    %9 = arith.mulf %1, %8 : vector<8x16xf32>
    %10 = arith.truncf %9 : vector<8x16xf32> to vector<8x16xbf16>
    %c0_3 = arith.constant 0 : index
    %c0_4 = arith.constant 0 : index
    %11 = vector.load %arg2[%c0_3, %c0_4] : memref<64x16xbf16, #tpu.memory_space<vmem>>, vector<64x16xbf16>
    %cst_5 = arith.constant dense<0.000000e+00> : vector<64x8xf32>
    %12 = tpu.matmul %11, %10, %cst_5 {dimension_numbers = #tpu.dot_dimension_numbers<[1], [1], [0], [0], [0, 0, 1, 0], [], []>} : vector<64x16xbf16>, vector<8x16xbf16>, vector<64x8xf32> -> vector<64x8xf32>
    %c0_6 = arith.constant 0 : index
    %c0_7 = arith.constant 0 : index
    %13 = vector.load %arg3[%c0_6, %c0_7] : memref<64x16xbf16, #tpu.memory_space<vmem>>, vector<64x16xbf16>
    %cst_8 = arith.constant dense<0.000000e+00> : vector<64x8xf32>
    %14 = tpu.matmul %13, %10, %cst_8 {dimension_numbers = #tpu.dot_dimension_numbers<[1], [1], [0], [0], [0, 0, 1, 0], [], []>} : vector<64x16xbf16>, vector<8x16xbf16>, vector<64x8xf32> -> vector<64x8xf32>
    %15 = arith.truncf %12 : vector<64x8xf32> to vector<64x8xbf16>
    %c0_9 = arith.constant 0 : index
    %c0_10 = arith.constant 0 : index
    %c0_11 = arith.constant 0 : index
    %16 = vector.load %arg4[%c0_9, %c0_10, %c0_11] : memref<1x64x8xbf16, #tpu.memory_space<vmem>>, vector<1x64x8xbf16>
    %17 = vector.shape_cast %16 : vector<1x64x8xbf16> to vector<64x8xbf16>
    %18 = vector.shape_cast %15 : vector<64x8xbf16> to vector<1x64x8xbf16>
    tpu.vector_store %arg4[%c0_9, %c0_10, %c0_11], %18 {strides = array<i32>} : memref<1x64x8xbf16, #tpu.memory_space<vmem>>, vector<1x64x8xbf16>,
    %19 = arith.truncf %14 : vector<64x8xf32> to vector<64x8xbf16>
    %c0_12 = arith.constant 0 : index
    %c0_13 = arith.constant 0 : index
    %c0_14 = arith.constant 0 : index
    %20 = vector.load %arg5[%c0_12, %c0_13, %c0_14] : memref<1x64x8xbf16, #tpu.memory_space<vmem>>, vector<1x64x8xbf16>
    %21 = vector.shape_cast %20 : vector<1x64x8xbf16> to vector<64x8xbf16>
    %22 = vector.shape_cast %19 : vector<64x8xbf16> to vector<1x64x8xbf16>
    tpu.vector_store %arg5[%c0_12, %c0_13, %c0_14], %22 {strides = array<i32>} : memref<1x64x8xbf16, #tpu.memory_space<vmem>>, vector<1x64x8xbf16>,
    return
  }
  func.func @transform_0(%arg0: i32) -> (i32, i32, i32) {
    %c0_i32 = arith.constant 0 : i32
    %c0_i32_0 = arith.constant 0 : i32
    %c0_i32_1 = arith.constant 0 : i32
    return %arg0, %c0_i32, %c0_i32_0 : i32, i32, i32
  }
  func.func @transform_1(%arg0: i32) -> (i32, i32) {
    %c0_i32 = arith.constant 0 : i32
    %c0_i32_0 = arith.constant 0 : i32
    %c0_i32_1 = arith.constant 0 : i32
    return %c0_i32, %c0_i32_0 : i32, i32
  }
  func.func @transform_2(%arg0: i32) -> (i32, i32) {
    %c0_i32 = arith.constant 0 : i32
    %c0_i32_0 = arith.constant 0 : i32
    %c0_i32_1 = arith.constant 0 : i32
    return %c0_i32, %c0_i32_0 : i32, i32
  }
  func.func @transform_3(%arg0: i32) -> (i32, i32, i32) {
    %c0_i32 = arith.constant 0 : i32
    %c0_i32_0 = arith.constant 0 : i32
    %c0_i32_1 = arith.constant 0 : i32
    return %arg0, %c0_i32, %c0_i32_0 : i32, i32, i32
  }
  func.func @transform_4(%arg0: i32) -> (i32, i32, i32) {
    %c0_i32 = arith.constant 0 : i32
    %c0_i32_0 = arith.constant 0 : i32
    %c0_i32_1 = arith.constant 0 : i32
    return %arg0, %c0_i32, %c0_i32_0 : i32, i32, i32
  }
}

</mosaic_0001>

<llo_original>
// kernel: tpu_custom_call.1
$region0: #{tpu_custom_call.1}
  #allocation0 [shape = 'u32[]', space=smem, size = 0x4, offset = 0x4, fixed_abs, tag = 'smem constant byte address 0x4 - core index']
  #allocation1 [shape = 'u32[144,128]{1,0:T(1,128)}', space=vmem, size = 0x12000, scoped, tag = 'internal scratch']
  %s0 = inlined_call_operand.vmem [shape: f32[2,8,16], index: 0, kind: input, shape index: {}]
  %s1 = inlined_call_operand.vmem [shape: bf16[64,16], index: 1, kind: input, shape index: {}]
  %s2 = inlined_call_operand.vmem [shape: bf16[64,16], index: 2, kind: input, shape index: {}]
  %s3 = inlined_call_operand.vmem [shape: bf16[2,64,8], index: 3, kind: output, shape index: {0}]
  %s4 = inlined_call_operand.vmem [shape: bf16[2,64,8], index: 4, kind: output, shape index: {1}]
  %5 = xla_tuple %s3, %s4
  %s6 = sld [smem:[#allocation0]]
  $region53: #{tpu_custom_call.1} parent=0
    _
  %s8 = ssub.s32 1, %s6
  %s9 = scalar_select 0, %s8, %s6
  loop: start=0, step=1, limit=4
  $region2: #{tpu_custom_call.1} parent=0 // loop_pre_header
    _
  $region3: #{tpu_custom_call.1} parent=0 // loop_header
    %s11 = sphi 0, %s15
    %p12 = scmp.ge.s32.totalorder %s11, 4
    %s21 = sphi 0, %s23
    %s24 = sphi 0, %s21
    %s25 = sphi 0, %s24
    %s41 = sphi 0, %s25
    %s45 = sphi 0, %s45
    %s47 = sphi 0, %s45
    %s48 = sphi 0, %s47
    %s62 = sphi 0, %s48
    %s66 = sphi 0, %s66
    %s68 = sphi 0, %s66
    %s69 = sphi 0, %s68
    %s83 = sphi 0, %s69
    %s89 = sphi 0, %s91
    %s92 = sphi 0, %s89
    %s93 = sphi 0, %s92
    %s109 = sphi 0, %s93
    %s115 = sphi 0, %s117
    %s118 = sphi 0, %s115
    %s119 = sphi 0, %s118
    %s135 = sphi 0, %s119
  $region4: #{tpu_custom_call.1} parent=0 // loop_header_branch
    %14 = sbr.rel (%p12) target = $region8
  $region5: #{tpu_custom_call.1} parent=0 // loop_body
    %s16 = ssub.s32 %s11, 1
    %s17 = ssub.s32 %s11, 2
    %s18 = sadd.s32 %s11, 1
    %s19 = ssub.s32 %s11, %s18
    %p20 = scmp.eq.s32.totalorder %s19, 0
    %s22 = sadd.s32 %s21, 1
    %s23 = scalar_select %p20, %s21, %s22
    %p26 = pneg %p20
    %p27 = scmp.eq.s32.totalorder %s11, 1
    %p28 = por %p26, %p27
    %p29 = scmp.ne.s32.totalorder %s21, %s24
    %p30 = scmp.eq.s32.totalorder %s11, 0
    %p31 = por %p29, %p30
    %p32 = scmp.ne.s32.totalorder %s21, %s24
    %p33 = scmp.eq.s32.totalorder %s16, 1
    %p34 = por %p32, %p33
    %p35 = scmp.ne.s32.totalorder %s24, %s25
    %p36 = scmp.eq.s32.totalorder %s16, 0
    %p37 = por %p35, %p36
    %p38 = scmp.ne.s32.totalorder %s24, %s25
    %p39 = scmp.eq.s32.totalorder %s17, 1
    %p40 = por %p38, %p39
    %p42 = scmp.ne.s32.totalorder %s25, %s41
    %p43 = scmp.eq.s32.totalorder %s17, 0
    %p44 = por %p42, %p43
    %s46 = sadd.s32 %s45, 1
    %p49 = scmp.eq.s32.totalorder %s11, 1
    %p50 = scmp.ne.s32.totalorder %s45, %s47
    %p51 = scmp.eq.s32.totalorder %s11, 0
    %p52 = por %p50, %p51
    %p53 = scmp.ne.s32.totalorder %s45, %s47
    %p54 = scmp.eq.s32.totalorder %s16, 1
    %p55 = por %p53, %p54
    %p56 = scmp.ne.s32.totalorder %s47, %s48
    %p57 = scmp.eq.s32.totalorder %s16, 0
    %p58 = por %p56, %p57
    %p59 = scmp.ne.s32.totalorder %s47, %s48
    %p60 = scmp.eq.s32.totalorder %s17, 1
    %p61 = por %p59, %p60
    %p63 = scmp.ne.s32.totalorder %s48, %s62
    %p64 = scmp.eq.s32.totalorder %s17, 0
    %p65 = por %p63, %p64
    %s67 = sadd.s32 %s66, 1
    %p70 = scmp.eq.s32.totalorder %s11, 1
    %p71 = scmp.ne.s32.totalorder %s66, %s68
    %p72 = scmp.eq.s32.totalorder %s11, 0
    %p73 = por %p71, %p72
    %p74 = scmp.ne.s32.totalorder %s66, %s68
    %p75 = scmp.eq.s32.totalorder %s16, 1
    %p76 = por %p74, %p75
    %p77 = scmp.ne.s32.totalorder %s68, %s69
    %p78 = scmp.eq.s32.totalorder %s16, 0
    %p79 = por %p77, %p78
    %p80 = scmp.ne.s32.totalorder %s68, %s69
    %p81 = scmp.eq.s32.totalorder %s17, 1
    %p82 = por %p80, %p81
    %p84 = scmp.ne.s32.totalorder %s69, %s83
    %p85 = scmp.eq.s32.totalorder %s17, 0
    %p86 = por %p84, %p85
    %s87 = ssub.s32 %s11, %s18
    %p88 = scmp.eq.s32.totalorder %s87, 0
    %s90 = sadd.s32 %s89, 1
    %s91 = scalar_select %p88, %s89, %s90
    %p94 = pneg %p88
    %p95 = scmp.eq.s32.totalorder %s11, 1
    %p96 = por %p94, %p95
    %p97 = scmp.ne.s32.totalorder %s89, %s92
    %p98 = scmp.eq.s32.totalorder %s11, 0
    %p99 = por %p97, %p98
    %p100 = scmp.ne.s32.totalorder %s89, %s92
    %p101 = scmp.eq.s32.totalorder %s16, 1
    %p102 = por %p100, %p101
    %p103 = scmp.ne.s32.totalorder %s92, %s93
    %p104 = scmp.eq.s32.totalorder %s16, 0
    %p105 = por %p103, %p104
    %p106 = scmp.ne.s32.totalorder %s92, %s93
    %p107 = scmp.eq.s32.totalorder %s17, 1
    %p108 = por %p106, %p107
    %p110 = scmp.ne.s32.totalorder %s93, %s109
    %p111 = scmp.eq.s32.totalorder %s17, 0
    %p112 = por %p110, %p111
    %s113 = ssub.s32 %s11, %s18
    %p114 = scmp.eq.s32.totalorder %s113, 0
    %s116 = sadd.s32 %s115, 1
    %s117 = scalar_select %p114, %s115, %s116
    %p120 = pneg %p114
    %p121 = scmp.eq.s32.totalorder %s11, 1
    %p122 = por %p120, %p121
    %p123 = scmp.ne.s32.totalorder %s115, %s118
    %p124 = scmp.eq.s32.totalorder %s11, 0
    %p125 = por %p123, %p124
    %p126 = scmp.ne.s32.totalorder %s115, %s118
    %p127 = scmp.eq.s32.totalorder %s16, 1
    %p128 = por %p126, %p127
    %p129 = scmp.ne.s32.totalorder %s118, %s119
    %p130 = scmp.eq.s32.totalorder %s16, 0
    %p131 = por %p129, %p130
    %p132 = scmp.ne.s32.totalorder %s118, %s119
    %p133 = scmp.eq.s32.totalorder %s17, 1
    %p134 = por %p132, %p133
    %p136 = scmp.ne.s32.totalorder %s119, %s135
    %p137 = scmp.eq.s32.totalorder %s17, 0
    %p138 = por %p136, %p137
    %p139 = scmp.le.s32.totalorder 1, %s11
    %p140 = scmp.lt.s32.totalorder %s11, 3
    %p141 = pnand %p139, %p140
    %p142 = pneg %p141
    // Predicated region
    $region9: #{tpu_custom_call.1} parent=5 // pred_check
      _
    $region10: #{tpu_custom_call.1} parent=5 // pred_check_branch
      %144 = sbr.rel (%p141) target = $region12
    $region11: #{tpu_custom_call.1} parent=5 // pred_region
      %s145 = ssub.s32 %s11, 1
      // Predicated region
      $region13: #{tpu_custom_call.1} parent=11 // pred_check
        %p146 = pneg %p58
      $region14: #{tpu_custom_call.1} parent=11 // pred_check_branch
        %148 = sbr.rel (%p146) target = $region16
      $region15: #{tpu_custom_call.1} parent=11 // pred_region
        _
      $region16: #{tpu_custom_call.1} parent=11 // pred_fallthru
        _
      // Predicated region
      $region17: #{tpu_custom_call.1} parent=11 // pred_check
        %p149 = pneg %p79
      $region18: #{tpu_custom_call.1} parent=11 // pred_check_branch
        %151 = sbr.rel (%p149) target = $region20
      $region19: #{tpu_custom_call.1} parent=11 // pred_region
        _
      $region20: #{tpu_custom_call.1} parent=11 // pred_fallthru
        _
    $region12: #{tpu_custom_call.1} parent=5 // pred_fallthru
      _
    %p152 = scmp.lt.s32.totalorder %s11, 2
    // Predicated region
    $region21: #{tpu_custom_call.1} parent=5 // pred_check
      %p153 = pneg %p152
    $region22: #{tpu_custom_call.1} parent=5 // pred_check_branch
      %155 = sbr.rel (%p153) target = $region24
    $region23: #{tpu_custom_call.1} parent=5 // pred_region
      // Predicated region
      $region25: #{tpu_custom_call.1} parent=23 // pred_check
        %p156 = pneg %p31
      $region26: #{tpu_custom_call.1} parent=23 // pred_check_branch
        %158 = sbr.rel (%p156) target = $region28
      $region27: #{tpu_custom_call.1} parent=23 // pred_region
        %p159 = scmp.lt.s32.totalorder %s11, 1
        %s160 = scalar_select %p159, %s11, 1
        %s161 = smul.addr %s160, 8
        %s162 = scalar_lea.vmem %s0, %s161
      $region28: #{tpu_custom_call.1} parent=23 // pred_fallthru
        _
    $region24: #{tpu_custom_call.1} parent=5 // pred_fallthru
      _
    %p163 = scmp.le.s32.totalorder 1, %s11
    %p164 = scmp.lt.s32.totalorder %s11, 3
    %p165 = pnand %p163, %p164
    %p166 = pneg %p165
    // Predicated region
    $region29: #{tpu_custom_call.1} parent=5 // pred_check
      _
    $region30: #{tpu_custom_call.1} parent=5 // pred_check_branch
      %168 = sbr.rel (%p165) target = $region32
    $region31: #{tpu_custom_call.1} parent=5 // pred_region
      %s169 = ssub.s32 %s11, 1
      %p170 = scmp.lt.s32.totalorder %s16, 1
      %s171 = scalar_select %p170, %s16, 1
      %s172 = smul.addr %s171, 8
      %s173 = scalar_lea.vmem %s0, %s172
      %p174 = pneg %p37
      %p175 = pneg %p34
      %p176 = pneg %p58
      %p177 = pneg %p55
      %p178 = pneg %p79
      %p179 = pneg %p76
      %p180 = pneg %p105
      %p181 = pneg %p102
      %p182 = scmp.lt.s32.totalorder %s16, 1
      %s183 = scalar_select %p182, %s16, 1
      %s184 = smul.addr %s183, 8
      %s185 = smul.addr %s184, 4
      %s186 = scalar_lea.vmem %s3, %s185
      %p187 = pneg %p131
      %p188 = pneg %p128
      %p189 = scmp.lt.s32.totalorder %s16, 1
      %s190 = scalar_select %p189, %s16, 1
      %s191 = smul.addr %s190, 8
      %s192 = smul.addr %s191, 4
      %s193 = scalar_lea.vmem %s4, %s192
      %p194 = scmp.lt.s32.totalorder %s16, 1
      %s195 = scalar_select %p194, %s16, 1
      %s196 = smul.addr %s195, 8
      %s197 = scalar_lea.vmem %s0, %s196
      %p198 = scmp.lt.s32.totalorder %s16, 1
      %s199 = scalar_select %p198, %s16, 1
      %s200 = smul.addr %s199, 8
      %s201 = smul.addr %s200, 4
      %s202 = scalar_lea.vmem %s3, %s201
      %p203 = scmp.lt.s32.totalorder %s16, 1
      %s204 = scalar_select %p203, %s16, 1
      %s205 = smul.addr %s204, 8
      %s206 = smul.addr %s205, 4
      %s207 = scalar_lea.vmem %s4, %s206
      %v209 = vld [vmem:[%s197] sm:$0xff]
      %v210 = vmul.f32 %v209, %v209
      %vm211 = vcmask 130048
      %v212 = vsel %vm211, %v210, 0.0
      %213 = vadd.xlane.f32.xlu0 %v212
      %v214 = vpop.xlane.xlu0 %213
      %v215 = vmax.f32 %v214, 1e-24
      %v216 = vrsqrt.pop %v215
      %v217 = vmul.f32 %v209, %v216
      %v218 = vpack.c.bf16 %v217, %v217
      %v219 = vld [vmem:[%s1] sm:$0xf]
      %v220 = vld [vmem:[%s1 + $0x4] sm:$0xf]
      %v221 = vld [vmem:[%s1 + $0x8] sm:$0xf]
      %v222 = vld [vmem:[%s1 + $0xc] sm:$0xf]
      %v223 = vld [vmem:[%s1 + $0x10] sm:$0xf]
      %v224 = vld [vmem:[%s1 + $0x14] sm:$0xf]
      %v225 = vld [vmem:[%s1 + $0x18] sm:$0xf]
      %v226 = vld [vmem:[%s1 + $0x1c] sm:$0xf]
      %v235 = vunpack.c.l.b16 %v219
      %v236 = vunpack.c.l.b16 %v220
      %v237 = vunpack.c.l.b16 %v221
      %v238 = vunpack.c.l.b16 %v222
      %v239 = vunpack.c.l.b16 %v223
      %v240 = vunpack.c.l.b16 %v224
      %v241 = vunpack.c.l.b16 %v225
      %v242 = vunpack.c.l.b16 %v226
      %v243 = vpack.c.b16 %v236, %v235
      %v244 = vpack.c.b16 %v238, %v237
      %v245 = vpack.c.b16 %v240, %v239
      %v246 = vpack.c.b16 %v242, %v241
      %v248 = vsel %vm211, %v243, 0
      %v251 = vsel %vm211, %v244, 0
      %v254 = vsel %vm211, %v245, 0
      %v257 = vsel %vm211, %v246, 0
      %v260 = vsel %vm211, %v218, 0
      %262 = vmatprep.subr.bf16.mxu0 0
      %263 = vmatpush1.bf16.xpose.msra.mxu0 %v260
      %264 = vmatprep.subr.bf16.mxu0 0
      %265 = vmatpush1.bf16.xpose.msra.mxu0 0
      %266 = vmatprep.subr.bf16.mxu0 0
      %267 = vmatpush1.bf16.xpose.msra.mxu0 0
      %268 = vmatprep.subr.bf16.mxu0 0
      %269 = vmatpush1.bf16.xpose.msra.mxu0 0
      %270 = vmatprep.subr.bf16.mxu0 0
      %271 = vmatpush1.bf16.xpose.msra.mxu0 0
      %272 = vmatprep.subr.bf16.mxu0 0
      %273 = vmatpush1.bf16.xpose.msra.mxu0 0
      %274 = vmatprep.subr.bf16.mxu0 0
      %275 = vmatpush1.bf16.xpose.msra.mxu0 0
      %276 = vmatprep.subr.bf16.mxu0 0
      %277 = vmatpush1.bf16.xpose.msra.mxu0 0
      %278 = vmatprep.subr.bf16.mxu0 0
      %279 = vmatpush1.bf16.xpose.msra.mxu0 0
      %280 = vmatprep.subr.bf16.mxu0 0
      %281 = vmatpush1.bf16.xpose.msra.mxu0 0
      %282 = vmatprep.subr.bf16.mxu0 0
      %283 = vmatpush1.bf16.xpose.msra.mxu0 0
      %284 = vmatprep.subr.bf16.mxu0 0
      %285 = vmatpush1.bf16.xpose.msra.mxu0 0
      %286 = vmatprep.subr.bf16.mxu0 0
      %287 = vmatpush1.bf16.xpose.msra.mxu0 0
      %288 = vmatprep.subr.bf16.mxu0 0
      %289 = vmatpush1.bf16.xpose.msra.mxu0 0
      %290 = vmatprep.subr.bf16.mxu0 0
      %291 = vmatpush1.bf16.xpose.msra.mxu0 0
      %292 = vmatprep.subr.bf16.mxu0 0
      %293 = vmatpush1.bf16.xpose.msra.mxu0 0
      %294 = vmatprep.mubr.bf16.mxu0 0
      %295 = vmatmul.mubr.bf16.gmra.mrb[0].mxu0 %v248
      %v296 = vpop.f32.mrb[0].mxu0
      %v297 = vadd.f32 0.0, %v296
      %v298 = vpop.f32.mrb[0].mxu0
      %v299 = vpop.f32.mrb[0].mxu0
      %v300 = vadd.f32 0.0, %v299
      %v301 = vpop.f32.mrb[0].mxu0
      %302 = vmatprep.mubr.bf16.mxu0 0
      %303 = vmatmul.mubr.bf16.gmra.mrb[0].mxu0 %v251
      %v304 = vpop.f32.mrb[0].mxu0
      %v305 = vadd.f32 0.0, %v304
      %v306 = vpop.f32.mrb[0].mxu0
      %v307 = vpop.f32.mrb[0].mxu0
      %v308 = vadd.f32 0.0, %v307
      %v309 = vpop.f32.mrb[0].mxu0
      %310 = vmatprep.mubr.bf16.mxu0 0
      %311 = vmatmul.mubr.bf16.gmra.mrb[0].mxu0 %v254
      %v312 = vpop.f32.mrb[0].mxu0
      %v313 = vadd.f32 0.0, %v312
      %v314 = vpop.f32.mrb[0].mxu0
      %v315 = vpop.f32.mrb[0].mxu0
      %v316 = vadd.f32 0.0, %v315
      %v317 = vpop.f32.mrb[0].mxu0
      %318 = vmatprep.mubr.bf16.mxu0 0
      %319 = vmatmul.mubr.bf16.gmra.mrb[0].mxu0 %v257
      %v320 = vpop.f32.mrb[0].mxu0
      %v321 = vadd.f32 0.0, %v320
      %v322 = vpop.f32.mrb[0].mxu0
      %v323 = vpop.f32.mrb[0].mxu0
      %v324 = vadd.f32 0.0, %v323
      %v325 = vpop.f32.mrb[0].mxu0
      %326 = vdwg.mxu0
      %v327 = vld [vmem:[%s2] sm:$0xf]
      %v328 = vld [vmem:[%s2 + $0x4] sm:$0xf]
      %v329 = vld [vmem:[%s2 + $0x8] sm:$0xf]
      %v330 = vld [vmem:[%s2 + $0xc] sm:$0xf]
      %v331 = vld [vmem:[%s2 + $0x10] sm:$0xf]
      %v332 = vld [vmem:[%s2 + $0x14] sm:$0xf]
      %v333 = vld [vmem:[%s2 + $0x18] sm:$0xf]
      %v334 = vld [vmem:[%s2 + $0x1c] sm:$0xf]
      %v343 = vunpack.c.l.b16 %v327
      %v344 = vunpack.c.l.b16 %v328
      %v345 = vunpack.c.l.b16 %v329
      %v346 = vunpack.c.l.b16 %v330
      %v347 = vunpack.c.l.b16 %v331
      %v348 = vunpack.c.l.b16 %v332
      %v349 = vunpack.c.l.b16 %v333
      %v350 = vunpack.c.l.b16 %v334
      %v351 = vpack.c.b16 %v344, %v343
      %v352 = vpack.c.b16 %v346, %v345
      %v353 = vpack.c.b16 %v348, %v347
      %v354 = vpack.c.b16 %v350, %v349
      %v356 = vsel %vm211, %v351, 0
      %v359 = vsel %vm211, %v352, 0
      %v362 = vsel %vm211, %v353, 0
      %v365 = vsel %vm211, %v354, 0
      %367 = vmatprep.subr.bf16.mxu0 0
      %368 = vmatpush1.bf16.xpose.msra.mxu0 %v260
      %369 = vmatprep.subr.bf16.mxu0 0
      %370 = vmatpush1.bf16.xpose.msra.mxu0 0
      %371 = vmatprep.subr.bf16.mxu0 0
      %372 = vmatpush1.bf16.xpose.msra.mxu0 0
      %373 = vmatprep.subr.bf16.mxu0 0
      %374 = vmatpush1.bf16.xpose.msra.mxu0 0
      %375 = vmatprep.subr.bf16.mxu0 0
      %376 = vmatpush1.bf16.xpose.msra.mxu0 0
      %377 = vmatprep.subr.bf16.mxu0 0
      %378 = vmatpush1.bf16.xpose.msra.mxu0 0
      %379 = vmatprep.subr.bf16.mxu0 0
      %380 = vmatpush1.bf16.xpose.msra.mxu0 0
      %381 = vmatprep.subr.bf16.mxu0 0
      %382 = vmatpush1.bf16.xpose.msra.mxu0 0
      %383 = vmatprep.subr.bf16.mxu0 0
      %384 = vmatpush1.bf16.xpose.msra.mxu0 0
      %385 = vmatprep.subr.bf16.mxu0 0
      %386 = vmatpush1.bf16.xpose.msra.mxu0 0
      %387 = vmatprep.subr.bf16.mxu0 0
      %388 = vmatpush1.bf16.xpose.msra.mxu0 0
      %389 = vmatprep.subr.bf16.mxu0 0
      %390 = vmatpush1.bf16.xpose.msra.mxu0 0
      %391 = vmatprep.subr.bf16.mxu0 0
      %392 = vmatpush1.bf16.xpose.msra.mxu0 0
      %393 = vmatprep.subr.bf16.mxu0 0
      %394 = vmatpush1.bf16.xpose.msra.mxu0 0
      %395 = vmatprep.subr.bf16.mxu0 0
      %396 = vmatpush1.bf16.xpose.msra.mxu0 0
      %397 = vmatprep.subr.bf16.mxu0 0
      %398 = vmatpush1.bf16.xpose.msra.mxu0 0
      %399 = vmatprep.mubr.bf16.mxu0 0
      %400 = vmatmul.mubr.bf16.gmra.mrb[0].mxu0 %v356
      %v401 = vpop.f32.mrb[0].mxu0
      %v402 = vadd.f32 0.0, %v401
      %v403 = vpop.f32.mrb[0].mxu0
      %v404 = vpop.f32.mrb[0].mxu0
      %v405 = vadd.f32 0.0, %v404
      %v406 = vpop.f32.mrb[0].mxu0
      %407 = vmatprep.mubr.bf16.mxu0 0
      %408 = vmatmul.mubr.bf16.gmra.mrb[0].mxu0 %v359
      %v409 = vpop.f32.mrb[0].mxu0
      %v410 = vadd.f32 0.0, %v409
      %v411 = vpop.f32.mrb[0].mxu0
      %v412 = vpop.f32.mrb[0].mxu0
      %v413 = vadd.f32 0.0, %v412
      %v414 = vpop.f32.mrb[0].mxu0
      %415 = vmatprep.mubr.bf16.mxu0 0
      %416 = vmatmul.mubr.bf16.gmra.mrb[0].mxu0 %v362
      %v417 = vpop.f32.mrb[0].mxu0
      %v418 = vadd.f32 0.0, %v417
      %v419 = vpop.f32.mrb[0].mxu0
      %v420 = vpop.f32.mrb[0].mxu0
      %v421 = vadd.f32 0.0, %v420
      %v422 = vpop.f32.mrb[0].mxu0
      %423 = vmatprep.mubr.bf16.mxu0 0
      %424 = vmatmul.mubr.bf16.gmra.mrb[0].mxu0 %v365
      %v425 = vpop.f32.mrb[0].mxu0
      %v426 = vadd.f32 0.0, %v425
      %v427 = vpop.f32.mrb[0].mxu0
      %v428 = vpop.f32.mrb[0].mxu0
      %v429 = vadd.f32 0.0, %v428
      %v430 = vpop.f32.mrb[0].mxu0
      %431 = vdwg.mxu0
      %v432 = vpack.c.bf16 %v300, %v297
      %v433 = vpack.c.bf16 %v308, %v305
      %v434 = vpack.c.bf16 %v316, %v313
      %v435 = vpack.c.bf16 %v324, %v321
      %v440 = vunpack.c.l.b16 %v432
      %v441 = vunpack.c.h.b16 %v432
      %v442 = vunpack.c.l.b16 %v433
      %v443 = vunpack.c.h.b16 %v433
      %v444 = vunpack.c.l.b16 %v434
      %v445 = vunpack.c.h.b16 %v434
      %v446 = vunpack.c.l.b16 %v435
      %v447 = vunpack.c.h.b16 %v435
      %v448 = vpack.c.b16 %v440, %v440
      %v449 = vpack.c.b16 %v441, %v441
      %v450 = vpack.c.b16 %v442, %v442
      %v451 = vpack.c.b16 %v443, %v443
      %v452 = vpack.c.b16 %v444, %v444
      %v453 = vpack.c.b16 %v445, %v445
      %v454 = vpack.c.b16 %v446, %v446
      %v455 = vpack.c.b16 %v447, %v447
      %vm464 = vcmask 60416
      %465 = vst.msk [vmem:[%s202] sm:$0xf] %vm464, %v448
      %466 = vst.msk [vmem:[%s202 + $0x4] sm:$0xf] %vm464, %v449
      %467 = vst.msk [vmem:[%s202 + $0x8] sm:$0xf] %vm464, %v450
      %468 = vst.msk [vmem:[%s202 + $0xc] sm:$0xf] %vm464, %v451
      %469 = vst.msk [vmem:[%s202 + $0x10] sm:$0xf] %vm464, %v452
      %470 = vst.msk [vmem:[%s202 + $0x14] sm:$0xf] %vm464, %v453
      %471 = vst.msk [vmem:[%s202 + $0x18] sm:$0xf] %vm464, %v454
      %472 = vst.msk [vmem:[%s202 + $0x1c] sm:$0xf] %vm464, %v455
      %v473 = vpack.c.bf16 %v405, %v402
      %v474 = vpack.c.bf16 %v413, %v410
      %v475 = vpack.c.bf16 %v421, %v418
      %v476 = vpack.c.bf16 %v429, %v426
      %v481 = vunpack.c.l.b16 %v473
      %v482 = vunpack.c.h.b16 %v473
      %v483 = vunpack.c.l.b16 %v474
      %v484 = vunpack.c.h.b16 %v474
      %v485 = vunpack.c.l.b16 %v475
      %v486 = vunpack.c.h.b16 %v475
      %v487 = vunpack.c.l.b16 %v476
      %v488 = vunpack.c.h.b16 %v476
      %v489 = vpack.c.b16 %v481, %v481
      %v490 = vpack.c.b16 %v482, %v482
      %v491 = vpack.c.b16 %v483, %v483
      %v492 = vpack.c.b16 %v484, %v484
      %v493 = vpack.c.b16 %v485, %v485
      %v494 = vpack.c.b16 %v486, %v486
      %v495 = vpack.c.b16 %v487, %v487
      %v496 = vpack.c.b16 %v488, %v488
      %505 = vst.msk [vmem:[%s207] sm:$0xf] %vm464, %v489
      %506 = vst.msk [vmem:[%s207 + $0x4] sm:$0xf] %vm464, %v490
      %507 = vst.msk [vmem:[%s207 + $0x8] sm:$0xf] %vm464, %v491
      %508 = vst.msk [vmem:[%s207 + $0xc] sm:$0xf] %vm464, %v492
      %509 = vst.msk [vmem:[%s207 + $0x10] sm:$0xf] %vm464, %v493
      %510 = vst.msk [vmem:[%s207 + $0x14] sm:$0xf] %vm464, %v494
      %511 = vst.msk [vmem:[%s207 + $0x18] sm:$0xf] %vm464, %v495
      %512 = vst.msk [vmem:[%s207 + $0x1c] sm:$0xf] %vm464, %v496
      %p513 = scmp.lt.s32.totalorder %s16, 1
      %s514 = scalar_select %p513, %s16, 1
      %s515 = smul.addr %s514, 8
      %s516 = smul.addr %s515, 4
      %s517 = scalar_lea.vmem %s3, %s516
      %p518 = scmp.lt.s32.totalorder %s16, 1
      %s519 = scalar_select %p518, %s16, 1
      %s520 = smul.addr %s519, 8
      %s521 = smul.addr %s520, 4
      %s522 = scalar_lea.vmem %s4, %s521
      // Predicated region
      $region33: #{tpu_custom_call.1} parent=31 // pred_check
        %p523 = pneg %p102
      $region34: #{tpu_custom_call.1} parent=31 // pred_check_branch
        %525 = sbr.rel (%p523) target = $region36
      $region35: #{tpu_custom_call.1} parent=31 // pred_region
        _
      $region36: #{tpu_custom_call.1} parent=31 // pred_fallthru
        _
      // Predicated region
      $region37: #{tpu_custom_call.1} parent=31 // pred_check
        %p526 = pneg %p128
      $region38: #{tpu_custom_call.1} parent=31 // pred_check_branch
        %528 = sbr.rel (%p526) target = $region40
      $region39: #{tpu_custom_call.1} parent=31 // pred_region
        _
      $region40: #{tpu_custom_call.1} parent=31 // pred_fallthru
        _
    $region32: #{tpu_custom_call.1} parent=5 // pred_fallthru
      _
    %p529 = scmp.le.s32.totalorder 2, %s11
    // Predicated region
    $region41: #{tpu_custom_call.1} parent=5 // pred_check
      %p530 = pneg %p529
    $region42: #{tpu_custom_call.1} parent=5 // pred_check_branch
      %532 = sbr.rel (%p530) target = $region44
    $region43: #{tpu_custom_call.1} parent=5 // pred_region
      %s533 = ssub.s32 %s11, 2
      // Predicated region
      $region45: #{tpu_custom_call.1} parent=43 // pred_check
        %p534 = pneg %p108
      $region46: #{tpu_custom_call.1} parent=43 // pred_check_branch
        %536 = sbr.rel (%p534) target = $region48
      $region47: #{tpu_custom_call.1} parent=43 // pred_region
        %p537 = scmp.lt.s32.totalorder %s17, 1
        %s538 = scalar_select %p537, %s17, 1
        %s539 = smul.addr %s538, 8
        %s540 = smul.addr %s539, 4
        %s541 = scalar_lea.vmem %s3, %s540
      $region48: #{tpu_custom_call.1} parent=43 // pred_fallthru
        _
      // Predicated region
      $region49: #{tpu_custom_call.1} parent=43 // pred_check
        %p542 = pneg %p134
      $region50: #{tpu_custom_call.1} parent=43 // pred_check_branch
        %544 = sbr.rel (%p542) target = $region52
      $region51: #{tpu_custom_call.1} parent=43 // pred_region
        %p545 = scmp.lt.s32.totalorder %s17, 1
        %s546 = scalar_select %p545, %s17, 1
        %s547 = smul.addr %s546, 8
        %s548 = smul.addr %s547, 4
        %s549 = scalar_lea.vmem %s4, %s548
      $region52: #{tpu_custom_call.1} parent=43 // pred_fallthru
        _
    $region44: #{tpu_custom_call.1} parent=5 // pred_fallthru
      _
  $region6: #{tpu_custom_call.1} parent=0 // loop_footer
    %s15 = sadd.s32 1, %s11
  $region7: #{tpu_custom_call.1} parent=0 // loop_footer_branch
    %10 = sbr.rel target = $region3
  $region8: #{tpu_custom_call.1} parent=0 // loop_exit
    _

</llo_original>
